<compile_context>
chip_gen: v6e
topology: v6e:2x2x1
jax: 0.10.0
libtpu: 0.0.40
codegen_flags: <defaults>
</compile_context>

<pallas_src>
import functools

import jax
import jax.numpy as jnp
from jax import lax
from jax.experimental import pallas as pl
from jax.experimental.pallas import tpu as pltpu

# ----- "config" (deterministic, synthetic; matches BaseConfig fields used) -----
TAU = 0.05          # cfg.execution.tau
MARGIN = 0.5        # cfg.execution.margin
LAMBDA = 0.3        # cfg.execution.lambda_  (0 < lambda < 1)


# --------------------------------------------------------------------------
# VMEM / tile sizing helpers (generation-aware).
# --------------------------------------------------------------------------
def _vmem_capacity_bytes():
    default = 128 * 1024 * 1024
    try:
        info = pltpu.get_tpu_info()
        return int(getattr(info, "vmem_capacity_bytes", default))
    except Exception:
        return default


def _scoped_vmem_limit():
    # 3/4 of physical VMEM: ~96 MiB on v5e/v6e (128 MiB physical), ~48 MiB on
    # v7x (64 MiB physical per TensorCore) -> headroom for compiler scratch.
    return (3 * _vmem_capacity_bytes()) // 4


def _round_up(x, m):
    return ((x + m - 1) // m) * m


def _largest_tile(total, cap):
    """Largest multiple-of-8 divisor of `total` (total % 8 == 0) that is <= cap."""
    cap = max(8, min(total, (cap // 8) * 8))
    for t in range(cap, 7, -8):
        if total % t == 0:
            return t
    return 8


def _choose_pool_tile(Bp, S, H, emb_isz, mask_isz, budget_bytes):
    # Per batch row = 1 query row + 2 key rows.  Count double-buffered input
    # DMA buffers, the in-kernel f32 upcast temp, masks and f32 pooled outputs.
    per_row = (3 * S * H * (2 * emb_isz + 4)
               + 3 * S * mask_isz * 2
               + 3 * H * 4 * 2)
    max_rows = max(8, budget_bytes // per_row)
    cap = max_rows
    if Bp >= 16:
        cap = min(cap, Bp // 2)   # >= 2 grid steps so v7x megacore can split
    return _largest_tile(Bp, cap)


def _choose_loss_tile(B, TB, H, budget_bytes):
    if B % 8 != 0:
        return B                  # tiny / irregular batch: single full block
    kv_bytes = 2 * TB * H * 4     # resident keys (counted double-buffered)
    per_row = 2 * H * 4 + 4 * TB * 4 + 2 * 3 * 4
    avail = max(0, budget_bytes - kv_bytes)
    max_rows = max(8, avail // per_row)
    cap = max_rows
    if B >= 16:
        cap = min(cap, B // 2)    # >= 2 grid steps for v7x
    return _largest_tile(B, cap)


# --------------------------------------------------------------------------
# Phase 1: masked sum pooling + L2 normalization, batch-tiled.
# --------------------------------------------------------------------------
def _pool_kernel(q_ref, k_ref, qm_ref, km_ref, qv_ref, kv_ref):
    """Pool one batch tile of queries (bt rows) and keys (2*bt rows)."""

    def pool(x_ref, m_ref):
        x = x_ref[...].astype(jnp.float32)          # (rows, S, H)
        m = m_ref[...].astype(jnp.float32)          # (rows, S)
        summed = jnp.sum(x * m[:, :, None], axis=1)  # (rows, H)
        # normalize(sum / count) == normalize(sum): the mean division cancels.
        # rsqrt goes to the EUP slot (off the VPU critical path); the eps
        # guard also makes all-zero (padded) rows map to the zero vector.
        inv_norm = lax.rsqrt(
            jnp.maximum(jnp.sum(summed * summed, axis=-1, keepdims=True),
                        1e-24))
        return summed * inv_norm

    qv_ref[...] = pool(q_ref, qm_ref)
    kv_ref[...] = pool(k_ref, km_ref)


# --------------------------------------------------------------------------
# Phase 2: similarity matmul + per-row InfoNCE / triplet statistics.
# --------------------------------------------------------------------------
def _loss_kernel(qv_ref, kv_ref, scores_ref, stats_ref, *, inv_tau):
    tb, _ = qv_ref.shape                             # query rows in this tile
    TB = kv_ref.shape[0]
    B = TB // 2
    i = pl.program_id(0)

    qv = qv_ref[...]                                 # (tb, H) f32, L2-normalized
    kv = kv_ref[...]                                 # (TB, H) f32, L2-normalized

    # NT-form matmul: contract hidden dims, no key-transpose copy.
    scores = lax.dot_general(qv, kv, (((1,), (1,)), ((), ())),
                             preferred_element_type=jnp.float32)  # (tb, TB)
    scores_ref[...] = scores

    # poss/negs as row-wise dots against the matching key rows (cheaper than
    # iota masks over the full (tb, TB) block).
    row0 = i * tb
    if tb % 8 == 0:
        row0 = pl.multiple_of(row0, 8)
    kpos = kv_ref[pl.ds(row0, tb), :]                # keys [i*tb, i*tb+tb)
    kneg = kv_ref[pl.ds(B + i * tb, tb), :]          # keys [B+i*tb, ...)
    poss = jnp.sum(qv * kpos, axis=-1, keepdims=True)   # (tb, 1)
    negs = jnp.sum(qv * kneg, axis=-1, keepdims=True)   # (tb, 1)

    # Per-row logsumexp of the tau-scaled scores (full 2B row is resident).
    scaled = scores * inv_tau
    m = jnp.max(scaled, axis=1, keepdims=True)
    lse = jnp.log(jnp.sum(jnp.exp(scaled - m), axis=1, keepdims=True)) + m

    stats_ref[...] = jnp.concatenate([poss, negs, lse], axis=1)  # (tb, 3)


# --------------------------------------------------------------------------
# Wrapper
# --------------------------------------------------------------------------
def hybrid_loss(query_embs, key_embs, q_mask, k_mask,
                tau=TAU, margin=MARGIN, lambda_=LAMBDA):
    """Pallas-backed HybridLoss forward (mean-pooling variant)."""
    B, S, H = query_embs.shape
    TB = key_embs.shape[0]
    assert TB == 2 * B and key_embs.shape[1:] == (S, H)
    assert q_mask.shape == (B, S) and k_mask.shape == (TB, S)

    limit = _scoped_vmem_limit()
    budget = int(limit * 0.85)

    # Masks as bf16: binary values are exact in bf16 and DMA bytes shrink.
    q_mask = q_mask.astype(jnp.bfloat16)
    k_mask = k_mask.astype(jnp.bfloat16)

    # Pad the batch to a multiple of 8 so the pooling grid always uses
    # (8,128)-legal, pipelined tiles.  Padded rows have zero masks (-> zero
    # pooled vectors) and are sliced off afterwards.
    Bp = B if B % 8 == 0 else _round_up(B, 8)
    if Bp != B:
        pad = Bp - B
        query_embs_p = jnp.pad(query_embs, ((0, pad), (0, 0), (0, 0)))
        q_mask_p = jnp.pad(q_mask, ((0, pad), (0, 0)))
        key_embs_p = jnp.pad(key_embs, ((0, 2 * pad), (0, 0), (0, 0)))
        k_mask_p = jnp.pad(k_mask, ((0, 2 * pad), (0, 0)))
    else:
        query_embs_p, q_mask_p = query_embs, q_mask
        key_embs_p, k_mask_p = key_embs, k_mask

    emb_isz = jnp.dtype(query_embs.dtype).itemsize
    mask_isz = jnp.dtype(q_mask.dtype).itemsize
    bt = _choose_pool_tile(Bp, S, H, emb_isz, mask_isz, budget)
    n_tiles = Bp // bt

    # ---- Phase 1: pooling (tiled grid over batch, megacore-shardable) ----
    pooled_q, pooled_k = pl.pallas_call(
        _pool_kernel,
        out_shape=(jax.ShapeDtypeStruct((Bp, H), jnp.float32),
                   jax.ShapeDtypeStruct((2 * Bp, H), jnp.float32)),
        grid=(n_tiles,),
        in_specs=[
            pl.BlockSpec((bt, S, H), lambda i: (i, 0, 0)),
            pl.BlockSpec((2 * bt, S, H), lambda i: (i, 0, 0)),
            pl.BlockSpec((bt, S), lambda i: (i, 0)),
            pl.BlockSpec((2 * bt, S), lambda i: (i, 0)),
        ],
        out_specs=(
            pl.BlockSpec((bt, H), lambda i: (i, 0)),
            pl.BlockSpec((2 * bt, H), lambda i: (i, 0)),
        ),
        compiler_params=pltpu.CompilerParams(
            dimension_semantics=("parallel",),
            vmem_limit_bytes=limit),
    )(query_embs_p, key_embs_p, q_mask_p, k_mask_p)

    qv = pooled_q[:B]
    kv = pooled_k[:TB]

    # ---- Phase 2: scores + per-row InfoNCE/triplet stats, row-tiled ----
    tb = _choose_loss_tile(B, TB, H, budget)
    nq = B // tb
    kernel = functools.partial(_loss_kernel, inv_tau=float(1.0 / tau))
    scores, stats = pl.pallas_call(
        kernel,
        out_shape=(
            jax.ShapeDtypeStruct((B, TB), jnp.float32),   # all_scores
            jax.ShapeDtypeStruct((B, 3), jnp.float32),    # [poss, negs, lse]
        ),
        grid=(nq,),
        in_specs=[
            pl.BlockSpec((tb, H), lambda i: (i, 0)),
            pl.BlockSpec((TB, H), lambda i: (0, 0)),      # keys stay resident
        ],
        out_specs=(
            pl.BlockSpec((tb, TB), lambda i: (i, 0)),
            pl.BlockSpec((tb, 3), lambda i: (i, 0)),
        ),
        compiler_params=pltpu.CompilerParams(
            dimension_semantics=("parallel",),
            vmem_limit_bytes=limit),
    )(qv, kv)

    # Tiny O(B) scalar epilogue in plain JAX (keeps the phase-2 axis parallel).
    poss = stats[:, 0]
    negs = stats[:, 1]
    lse = stats[:, 2]
    info_nce_loss = jnp.mean(lse - poss * (1.0 / tau))
    triplet_loss = jnp.mean(jnp.maximum(negs - poss + margin, 0.0))
    loss = lambda_ * triplet_loss + (1.0 - lambda_) * info_nce_loss

    return {
        "all_scores": scores,
        "targets": jnp.arange(B, dtype=jnp.int32),
        "poss": poss,
        "negs": negs,
        "loss": loss,
    }


# --------------------------------------------------------------------------
# Pure-JAX reference (mirrors the PyTorch module) for sanity checking.
# --------------------------------------------------------------------------
def _reference(query_embs, key_embs, q_mask, k_mask,
               tau=TAU, margin=MARGIN, lambda_=LAMBDA):
    qm = q_mask.astype(jnp.float32)
    km = k_mask.astype(jnp.float32)
    qsum = jnp.clip(qm.sum(axis=1, keepdims=True), 1e-9, None)
    qv = (query_embs.astype(jnp.float32) * qm[:, :, None]).sum(axis=1) / qsum
    qv = qv / jnp.maximum(jnp.linalg.norm(qv, axis=-1, keepdims=True), 1e-12)
    ksum = jnp.clip(km.sum(axis=1, keepdims=True), 1e-9, None)
    kv = (key_embs.astype(jnp.float32) * km[:, :, None]).sum(axis=1) / ksum
    kv = kv / jnp.maximum(jnp.linalg.norm(kv, axis=-1, keepdims=True), 1e-12)
    scores = qv @ kv.T
    B = scores.shape[0]
    t = jnp.arange(B)
    poss = scores[t, t]
    negs = scores[t, t + B]
    scaled = scores / tau
    log_probs = scaled - jax.scipy.special.logsumexp(scaled, axis=1,
                                                     keepdims=True)
    info_nce = -jnp.mean(log_probs[t, t])
    triplet = jnp.mean(jax.nn.relu((1 - poss) - (1 - negs) + margin))
    loss = lambda_ * triplet + (1 - lambda_) * info_nce
    return scores, poss, negs, loss


if __name__ == "__main__":
    B, S, H = 2, 8, 32
    key = jax.random.PRNGKey(0)
    k1, k2, k3, k4 = jax.random.split(key, 4)

    query_embs = jax.random.normal(k1, (B, S, H), dtype=jnp.float32)
    key_embs = jax.random.normal(k2, (2 * B, S, H), dtype=jnp.float32)
    # Binary masks with a guaranteed non-empty first token.
    q_mask = (jax.random.uniform(k3, (B, S)) > 0.3).astype(jnp.int32)
    k_mask = (jax.random.uniform(k4, (2 * B, S)) > 0.3).astype(jnp.int32)
    q_mask = q_mask.at[:, 0].set(1)
    k_mask = k_mask.at[:, 0].set(1)

    out = hybrid_loss(query_embs, key_embs, q_mask, k_mask)
    jax.block_until_ready(out["loss"])

    ref_scores, ref_poss, ref_negs, ref_loss = _reference(
        query_embs, key_embs, q_mask, k_mask)
    assert jnp.allclose(out["all_scores"], ref_scores, atol=1e-4)
    assert jnp.allclose(out["poss"], ref_poss, atol=1e-4)
    assert jnp.allclose(out["negs"], ref_negs, atol=1e-4)
    assert jnp.allclose(out["loss"], ref_loss, atol=1e-4)

    print("KERNEL_OK")
</pallas_src>

<mosaic_0001>
module attributes {stable_mosaic.version = 11 : i64} {
  func.func @_pool_kernel(%arg0: i32, %arg1: memref<8x8x32xf32, #tpu.memory_space<vmem>>, %arg2: memref<16x8x32xf32, #tpu.memory_space<vmem>>, %arg3: memref<8x8xbf16, #tpu.memory_space<vmem>>, %arg4: memref<16x8xbf16, #tpu.memory_space<vmem>>, %arg5: memref<8x32xf32, #tpu.memory_space<vmem>>, %arg6: memref<16x32xf32, #tpu.memory_space<vmem>>) attributes {dimension_semantics = [#tpu.dimension_semantics<parallel>], iteration_bounds = array<i64: 1>, scalar_prefetch = 0 : i64, scratch_operands = 0 : i64, tpu.core_type = #tpu.core_type<tc>, window_params = [{transform_indices = @transform_0, window_bounds = array<i64: 8, 8, 32>}, {transform_indices = @transform_1, window_bounds = array<i64: 16, 8, 32>}, {transform_indices = @transform_2, window_bounds = array<i64: 8, 8>}, {transform_indices = @transform_3, window_bounds = array<i64: 16, 8>}, {transform_indices = @transform_4, window_bounds = array<i64: 8, 32>}, {transform_indices = @transform_5, window_bounds = array<i64: 16, 32>}]} {
    %c0 = arith.constant 0 : index
    %c0_0 = arith.constant 0 : index
    %c0_1 = arith.constant 0 : index
    %0 = vector.load %arg1[%c0, %c0_0, %c0_1] : memref<8x8x32xf32, #tpu.memory_space<vmem>>, vector<8x8x32xf32>
    %c0_2 = arith.constant 0 : index
    %c0_3 = arith.constant 0 : index
    %1 = vector.load %arg3[%c0_2, %c0_3] : memref<8x8xbf16, #tpu.memory_space<vmem>>, vector<8x8xbf16>
    %2 = arith.extf %1 : vector<8x8xbf16> to vector<8x8xf32>
    %3 = vector.shape_cast %2 : vector<8x8xf32> to vector<8x8x1xf32>
    %4 = vector.broadcast %3 : vector<8x8x1xf32> to vector<8x8x32xf32>
    %5 = arith.mulf %0, %4 : vector<8x8x32xf32>
    %cst = arith.constant dense<0.000000e+00> : vector<8x32xf32>
    %6 = vector.multi_reduction <add>, %5, %cst [1] : vector<8x8x32xf32> to vector<8x32xf32>
    %7 = arith.mulf %6, %6 : vector<8x32xf32>
    %cst_4 = arith.constant dense<0.000000e+00> : vector<8xf32>
    %8 = vector.multi_reduction <add>, %7, %cst_4 [1] : vector<8x32xf32> to vector<8xf32>
    %9 = vector.shape_cast %8 : vector<8xf32> to vector<8x1xf32>
    %cst_5 = arith.constant 1.000000e-24 : f32
    %10 = vector.broadcast %cst_5 : f32 to vector<8x1xf32>
    %11 = arith.maximumf %9, %10 : vector<8x1xf32>
    %12 = math.rsqrt %11 : vector<8x1xf32>
    %13 = vector.broadcast %12 : vector<8x1xf32> to vector<8x32xf32>
    %14 = arith.mulf %6, %13 : vector<8x32xf32>
    %c0_6 = arith.constant 0 : index
    %c0_7 = arith.constant 0 : index
    %15 = vector.load %arg5[%c0_6, %c0_7] : memref<8x32xf32, #tpu.memory_space<vmem>>, vector<8x32xf32>
    tpu.vector_store %arg5[%c0_6, %c0_7], %14 {strides = array<i32>} : memref<8x32xf32, #tpu.memory_space<vmem>>, vector<8x32xf32>,
    %c0_8 = arith.constant 0 : index
    %c0_9 = arith.constant 0 : index
    %c0_10 = arith.constant 0 : index
    %16 = vector.load %arg2[%c0_8, %c0_9, %c0_10] : memref<16x8x32xf32, #tpu.memory_space<vmem>>, vector<16x8x32xf32>
    %c0_11 = arith.constant 0 : index
    %c0_12 = arith.constant 0 : index
    %17 = vector.load %arg4[%c0_11, %c0_12] : memref<16x8xbf16, #tpu.memory_space<vmem>>, vector<16x8xbf16>
    %18 = arith.extf %17 : vector<16x8xbf16> to vector<16x8xf32>
    %19 = vector.shape_cast %18 : vector<16x8xf32> to vector<16x8x1xf32>
    %20 = vector.broadcast %19 : vector<16x8x1xf32> to vector<16x8x32xf32>
    %21 = arith.mulf %16, %20 : vector<16x8x32xf32>
    %cst_13 = arith.constant dense<0.000000e+00> : vector<16x32xf32>
    %22 = vector.multi_reduction <add>, %21, %cst_13 [1] : vector<16x8x32xf32> to vector<16x32xf32>
    %23 = arith.mulf %22, %22 : vector<16x32xf32>
    %cst_14 = arith.constant dense<0.000000e+00> : vector<16xf32>
    %24 = vector.multi_reduction <add>, %23, %cst_14 [1] : vector<16x32xf32> to vector<16xf32>
    %25 = vector.shape_cast %24 : vector<16xf32> to vector<16x1xf32>
    %cst_15 = arith.constant 1.000000e-24 : f32
    %26 = vector.broadcast %cst_15 : f32 to vector<16x1xf32>
    %27 = arith.maximumf %25, %26 : vector<16x1xf32>
    %28 = math.rsqrt %27 : vector<16x1xf32>
    %29 = vector.broadcast %28 : vector<16x1xf32> to vector<16x32xf32>
    %30 = arith.mulf %22, %29 : vector<16x32xf32>
    %c0_16 = arith.constant 0 : index
    %c0_17 = arith.constant 0 : index
    %31 = vector.load %arg6[%c0_16, %c0_17] : memref<16x32xf32, #tpu.memory_space<vmem>>, vector<16x32xf32>
    tpu.vector_store %arg6[%c0_16, %c0_17], %30 {strides = array<i32>} : memref<16x32xf32, #tpu.memory_space<vmem>>, vector<16x32xf32>,
    return
  }
  func.func @transform_0(%arg0: i32) -> (i32, i32, i32) {
    %c0_i32 = arith.constant 0 : i32
    %c0_i32_0 = arith.constant 0 : i32
    %c0_i32_1 = arith.constant 0 : i32
    return %arg0, %c0_i32, %c0_i32_0 : i32, i32, i32
  }
  func.func @transform_1(%arg0: i32) -> (i32, i32, i32) {
    %c0_i32 = arith.constant 0 : i32
    %c0_i32_0 = arith.constant 0 : i32
    %c0_i32_1 = arith.constant 0 : i32
    return %arg0, %c0_i32, %c0_i32_0 : i32, i32, i32
  }
  func.func @transform_2(%arg0: i32) -> (i32, i32) {
    %c0_i32 = arith.constant 0 : i32
    %c0_i32_0 = arith.constant 0 : i32
    return %arg0, %c0_i32 : i32, i32
  }
  func.func @transform_3(%arg0: i32) -> (i32, i32) {
    %c0_i32 = arith.constant 0 : i32
    %c0_i32_0 = arith.constant 0 : i32
    return %arg0, %c0_i32 : i32, i32
  }
  func.func @transform_4(%arg0: i32) -> (i32, i32) {
    %c0_i32 = arith.constant 0 : i32
    %c0_i32_0 = arith.constant 0 : i32
    return %arg0, %c0_i32 : i32, i32
  }
  func.func @transform_5(%arg0: i32) -> (i32, i32) {
    %c0_i32 = arith.constant 0 : i32
    %c0_i32_0 = arith.constant 0 : i32
    return %arg0, %c0_i32 : i32, i32
  }
}

</mosaic_0001>

<llo_original>
// kernel: tpu_custom_call.1
$region0: #{tpu_custom_call.1}
  #allocation0 [shape = 'u32[]', space=smem, size = 0x4, offset = 0x4, fixed_abs, tag = 'smem constant byte address 0x4 - core index']
  #allocation1 [shape = 'u32[144,128]{1,0:T(1,128)}', space=vmem, size = 0x12000, scoped, tag = 'internal scratch']
  %s0 = inlined_call_operand.hbm [shape: f32[8,8,32], index: 0, kind: input, shape index: {}]
  %s1 = inlined_call_operand.hbm [shape: f32[16,8,32], index: 1, kind: input, shape index: {}]
  %s2 = inlined_call_operand.vmem [shape: bf16[8,8], index: 2, kind: input, shape index: {}]
  %s3 = inlined_call_operand.vmem [shape: bf16[16,8], index: 3, kind: input, shape index: {}]
  %s4 = inlined_call_operand.hbm [shape: f32[8,32], index: 4, kind: output, shape index: {0}]
  %s5 = inlined_call_operand.hbm [shape: f32[16,32], index: 5, kind: output, shape index: {1}]
  %6 = xla_tuple %s4, %s5
  %s7 = sld [smem:[#allocation0]]
  $region42: #{tpu_custom_call.1} parent=0
    _
  %s9 = ssub.s32 1, %s7
  %s10 = scalar_select 0, %s9, %s7
  $region1: #{tpu_custom_call.1} parent=0
    #allocation2 [shape = 'u8[32768]{0}', space=vmem, size = 0x8000, scoped, tag = 'input window, operand 0, single buffered']
    #allocation3 [shape = 's32[1]{0}', space=sflag, size = 0x4, scoped, tag = 'scoped memory for tpu_custom_call.1']
    #allocation4 [shape = 's32[1]{0}', space=sflag, size = 0x4, scoped, tag = 'scoped memory for tpu_custom_call.1']
    #allocation5 [shape = 'u8[65536]{0}', space=vmem, size = 0x10000, scoped, tag = 'input window, operand 1, single buffered']
    #allocation6 [shape = 's32[1]{0}', space=sflag, size = 0x4, scoped, tag = 'scoped memory for tpu_custom_call.1']
    #allocation7 [shape = 'u8[4096]{0}', space=vmem, size = 0x1000, scoped, tag = 'output window, operand 0, single buffered']
    #allocation8 [shape = 'u8[8192]{0}', space=vmem, size = 0x2000, scoped, tag = 'output window, operand 1, single buffered']
    #allocation9 [shape = 's32[1]{0}', space=sflag, size = 0x4, scoped, tag = 'scoped memory for tpu_custom_call.1']
    %11 = vsyncpa [#allocation3], 0
    %12 = vsyncpa [#allocation6], 0
    %13 = vsyncpa [#allocation4], 0
    %14 = vsyncpa [#allocation9], 0
    // Predicated region
    $region2: #{tpu_custom_call.1} parent=1 // pred_check
      _
    $region3: #{tpu_custom_call.1} parent=1 // pred_check_branch
      %16 = sbr.rel (0) target = $region5
    $region4: #{tpu_custom_call.1} parent=1 // pred_region
      %s18 = ssub.s32 1024, 1024
      %19 = vsyncadd [#allocation3], %s18
      %s20 = sshll.u32 [#allocation2], 4
      %s21 = int_to_ptr.vmem [resolvable:$true] %s20
      %26 = dma.hbm_to_vmem [thread:$0]  %s0, 1024, %s21, [#allocation3], 128, 128, 8
    $region5: #{tpu_custom_call.1} parent=1 // pred_fallthru
      _
    // Predicated region
    $region6: #{tpu_custom_call.1} parent=1 // pred_check
      _
    $region7: #{tpu_custom_call.1} parent=1 // pred_check_branch
      %28 = sbr.rel (0) target = $region9
    $region8: #{tpu_custom_call.1} parent=1 // pred_region
      %s30 = ssub.s32 2048, 2048
      %31 = vsyncadd [#allocation6], %s30
      %s32 = sshll.u32 [#allocation5], 4
      %s33 = int_to_ptr.vmem [resolvable:$true] %s32
      %38 = dma.hbm_to_vmem [thread:$0]  %s1, 2048, %s33, [#allocation6], 128, 128, 8
    $region9: #{tpu_custom_call.1} parent=1 // pred_fallthru
      _
    // Predicated region
    $region10: #{tpu_custom_call.1} parent=1 // pred_check
      _
    $region11: #{tpu_custom_call.1} parent=1 // pred_check_branch
      %40 = sbr.rel (0) target = $region13
    $region12: #{tpu_custom_call.1} parent=1 // pred_region
      _
    $region13: #{tpu_custom_call.1} parent=1 // pred_fallthru
      _
    // Predicated region
    $region14: #{tpu_custom_call.1} parent=1 // pred_check
      _
    $region15: #{tpu_custom_call.1} parent=1 // pred_check_branch
      %42 = sbr.rel (0) target = $region17
    $region16: #{tpu_custom_call.1} parent=1 // pred_region
      _
    $region17: #{tpu_custom_call.1} parent=1 // pred_fallthru
      _
    // Predicated region
    $region18: #{tpu_custom_call.1} parent=1 // pred_check
      _
    $region19: #{tpu_custom_call.1} parent=1 // pred_check_branch
      %44 = sbr.rel (0) target = $region21
    $region20: #{tpu_custom_call.1} parent=1 // pred_region
      %45 = dma.done [#allocation3], 1024
    $region21: #{tpu_custom_call.1} parent=1 // pred_fallthru
      _
    // Predicated region
    $region22: #{tpu_custom_call.1} parent=1 // pred_check
      _
    $region23: #{tpu_custom_call.1} parent=1 // pred_check_branch
      %47 = sbr.rel (0) target = $region25
    $region24: #{tpu_custom_call.1} parent=1 // pred_region
      %48 = dma.done [#allocation6], 2048
    $region25: #{tpu_custom_call.1} parent=1 // pred_fallthru
      _
    %v49 = vld [vmem:[#allocation2] sm:$0xff]
    %v50 = vld [vmem:[#allocation2 + $0x8] sm:$0xff]
    %v51 = vld [vmem:[#allocation2 + $0x10] sm:$0xff]
    %v52 = vld [vmem:[#allocation2 + $0x18] sm:$0xff]
    %v53 = vld [vmem:[#allocation2 + $0x20] sm:$0xff]
    %v54 = vld [vmem:[#allocation2 + $0x28] sm:$0xff]
    %v55 = vld [vmem:[#allocation2 + $0x30] sm:$0xff]
    %v56 = vld [vmem:[#allocation2 + $0x38] sm:$0xff]
    %v57 = vld [vmem:[%s2] sm:$0xf]
    %v58 = vunpack.c.l.bf16 %v57
    %v59 = vlaneseq
    %v60 = vshrl.u32 %v59, 7
    %v61 = vsub.s32 0, %v60
    %v62 = vrot.slane %v58, %v61
    %64 = vbcast.lane.b32.xlu0 %v62, 256
    %v65 = vpop.permute.xlu0 %64
    %v66 = vlaneseq
    %v67 = vshrl.u32 %v66, 7
    %v68 = vsub.s32 1, %v67
    %v69 = vrot.slane %v58, %v68
    %71 = vbcast.lane.b32.xlu0 %v69, 256
    %v72 = vpop.permute.xlu0 %71
    %v73 = vlaneseq
    %v74 = vshrl.u32 %v73, 7
    %v75 = vsub.s32 2, %v74
    %v76 = vrot.slane %v58, %v75
    %78 = vbcast.lane.b32.xlu0 %v76, 256
    %v79 = vpop.permute.xlu0 %78
    %v80 = vlaneseq
    %v81 = vshrl.u32 %v80, 7
    %v82 = vsub.s32 3, %v81
    %v83 = vrot.slane %v58, %v82
    %85 = vbcast.lane.b32.xlu0 %v83, 256
    %v86 = vpop.permute.xlu0 %85
    %v87 = vlaneseq
    %v88 = vshrl.u32 %v87, 7
    %v89 = vsub.s32 4, %v88
    %v90 = vrot.slane %v58, %v89
    %92 = vbcast.lane.b32.xlu0 %v90, 256
    %v93 = vpop.permute.xlu0 %92
    %v94 = vlaneseq
    %v95 = vshrl.u32 %v94, 7
    %v96 = vsub.s32 5, %v95
    %v97 = vrot.slane %v58, %v96
    %99 = vbcast.lane.b32.xlu0 %v97, 256
    %v100 = vpop.permute.xlu0 %99
    %v101 = vlaneseq
    %v102 = vshrl.u32 %v101, 7
    %v103 = vsub.s32 6, %v102
    %v104 = vrot.slane %v58, %v103
    %106 = vbcast.lane.b32.xlu0 %v104, 256
    %v107 = vpop.permute.xlu0 %106
    %v108 = vlaneseq
    %v109 = vshrl.u32 %v108, 7
    %v110 = vsub.s32 7, %v109
    %v111 = vrot.slane %v58, %v110
    %113 = vbcast.lane.b32.xlu0 %v111, 256
    %v114 = vpop.permute.xlu0 %113
    %v115 = vmul.f32 %v49, %v65
    %v116 = vmul.f32 %v50, %v72
    %v117 = vmul.f32 %v51, %v79
    %v118 = vmul.f32 %v52, %v86
    %v119 = vmul.f32 %v53, %v93
    %v120 = vmul.f32 %v54, %v100
    %v121 = vmul.f32 %v55, %v107
    %v122 = vmul.f32 %v56, %v114
    %vm123 = vcmask 261120
    %v124 = vsel %vm123, %v115, 0.0
    %v125 = vrot.slane %v124, 4
    %v126 = vadd.f32 %v124, %v125
    %v127 = vrot.slane %v126, 2
    %v128 = vadd.f32 %v126, %v127
    %v129 = vrot.slane %v128, 1
    %v130 = vadd.f32 %v128, %v129
    %v131 = vsel %vm123, %v116, 0.0
    %v132 = vrot.slane %v131, 4
    %v133 = vadd.f32 %v131, %v132
    %v134 = vrot.slane %v133, 2
    %v135 = vadd.f32 %v133, %v134
    %v136 = vrot.slane %v135, 1
    %v137 = vadd.f32 %v135, %v136
    %v138 = vsel %vm123, %v117, 0.0
    %v139 = vrot.slane %v138, 4
    %v140 = vadd.f32 %v138, %v139
    %v141 = vrot.slane %v140, 2
    %v142 = vadd.f32 %v140, %v141
    %v143 = vrot.slane %v142, 1
    %v144 = vadd.f32 %v142, %v143
    %v145 = vsel %vm123, %v118, 0.0
    %v146 = vrot.slane %v145, 4
    %v147 = vadd.f32 %v145, %v146
    %v148 = vrot.slane %v147, 2
    %v149 = vadd.f32 %v147, %v148
    %v150 = vrot.slane %v149, 1
    %v151 = vadd.f32 %v149, %v150
    %v152 = vsel %vm123, %v119, 0.0
    %v153 = vrot.slane %v152, 4
    %v154 = vadd.f32 %v152, %v153
    %v155 = vrot.slane %v154, 2
    %v156 = vadd.f32 %v154, %v155
    %v157 = vrot.slane %v156, 1
    %v158 = vadd.f32 %v156, %v157
    %v159 = vsel %vm123, %v120, 0.0
    %v160 = vrot.slane %v159, 4
    %v161 = vadd.f32 %v159, %v160
    %v162 = vrot.slane %v161, 2
    %v163 = vadd.f32 %v161, %v162
    %v164 = vrot.slane %v163, 1
    %v165 = vadd.f32 %v163, %v164
    %v166 = vsel %vm123, %v121, 0.0
    %v167 = vrot.slane %v166, 4
    %v168 = vadd.f32 %v166, %v167
    %v169 = vrot.slane %v168, 2
    %v170 = vadd.f32 %v168, %v169
    %v171 = vrot.slane %v170, 1
    %v172 = vadd.f32 %v170, %v171
    %v173 = vsel %vm123, %v122, 0.0
    %v174 = vrot.slane %v173, 4
    %v175 = vadd.f32 %v173, %v174
    %v176 = vrot.slane %v175, 2
    %v177 = vadd.f32 %v175, %v176
    %v178 = vrot.slane %v177, 1
    %v179 = vadd.f32 %v177, %v178
    %v180 = vmul.f32 %v130, %v130
    %v181 = vmul.f32 %v137, %v137
    %v182 = vmul.f32 %v144, %v144
    %v183 = vmul.f32 %v151, %v151
    %v184 = vmul.f32 %v158, %v158
    %v185 = vmul.f32 %v165, %v165
    %v186 = vmul.f32 %v172, %v172
    %v187 = vmul.f32 %v179, %v179
    %vm196 = vcmask 1041409
    %v197 = vsel %vm196, %v181, %v180
    %vm198 = vcmask 1042434
    %v199 = vsel %vm198, %v182, %v197
    %vm200 = vcmask 1043459
    %v201 = vsel %vm200, %v183, %v199
    %vm202 = vcmask 1044484
    %v203 = vsel %vm202, %v184, %v201
    %vm204 = vcmask 1045509
    %v205 = vsel %vm204, %v185, %v203
    %vm206 = vcmask 1046534
    %v207 = vsel %vm206, %v186, %v205
    %vm208 = vcmask 1047559
    %v209 = vsel %vm208, %v187, %v207
    %v211 = vsel %vm123, %v209, 0.0
    %212 = vadd.xlane.f32.xlu0 %v211
    %v213 = vpop.xlane.xlu0 %212
    %v214 = vmax.f32 %v213, 1e-24
    %v215 = vrsqrt.pop %v214
    %v217 = vrot.slane %v215, 1
    %v218 = vrot.slane %v215, 2
    %v219 = vrot.slane %v215, 3
    %v220 = vrot.slane %v215, 4
    %v221 = vrot.slane %v215, 5
    %v222 = vrot.slane %v215, 6
    %v223 = vrot.slane %v215, 7
    %v232 = vmul.f32 %v130, %v215
    %v233 = vmul.f32 %v137, %v217
    %v234 = vmul.f32 %v144, %v218
    %v235 = vmul.f32 %v151, %v219
    %v236 = vmul.f32 %v158, %v220
    %v237 = vmul.f32 %v165, %v221
    %v238 = vmul.f32 %v172, %v222
    %v239 = vmul.f32 %v179, %v223
    %v248 = vrot.slane %v233, 7
    %v249 = vsel %vm196, %v248, %v232
    %v250 = vrot.slane %v234, 6
    %v251 = vsel %vm198, %v250, %v249
    %v252 = vrot.slane %v235, 5
    %v253 = vsel %vm200, %v252, %v251
    %v254 = vrot.slane %v236, 4
    %v255 = vsel %vm202, %v254, %v253
    %v256 = vrot.slane %v237, 3
    %v257 = vsel %vm204, %v256, %v255
    %v258 = vrot.slane %v238, 2
    %v259 = vsel %vm206, %v258, %v257
    %v260 = vrot.slane %v239, 1
    %v261 = vsel %vm208, %v260, %v259
    %263 = vst.msk [vmem:[#allocation7] sm:$0xff] %vm123, %v261
    %v264 = vld [vmem:[#allocation5] sm:$0xff]
    %v265 = vld [vmem:[#allocation5 + $0x8] sm:$0xff]
    %v266 = vld [vmem:[#allocation5 + $0x10] sm:$0xff]
    %v267 = vld [vmem:[#allocation5 + $0x18] sm:$0xff]
    %v268 = vld [vmem:[#allocation5 + $0x20] sm:$0xff]
    %v269 = vld [vmem:[#allocation5 + $0x28] sm:$0xff]
    %v270 = vld [vmem:[#allocation5 + $0x30] sm:$0xff]
    %v271 = vld [vmem:[#allocation5 + $0x38] sm:$0xff]
    %v272 = vld [vmem:[#allocation5 + $0x40] sm:$0xff]
    %v273 = vld [vmem:[#allocation5 + $0x48] sm:$0xff]
    %v274 = vld [vmem:[#allocation5 + $0x50] sm:$0xff]
    %v275 = vld [vmem:[#allocation5 + $0x58] sm:$0xff]
    %v276 = vld [vmem:[#allocation5 + $0x60] sm:$0xff]
    %v277 = vld [vmem:[#allocation5 + $0x68] sm:$0xff]
    %v278 = vld [vmem:[#allocation5 + $0x70] sm:$0xff]
    %v279 = vld [vmem:[#allocation5 + $0x78] sm:$0xff]
    %v280 = vld [vmem:[%s3] sm:$0xf]
    %v281 = vld [vmem:[%s3 + $0x4] sm:$0xf]
    %v282 = vunpack.c.l.bf16 %v280
    %v283 = vunpack.c.l.bf16 %v281
    %v284 = vlaneseq
    %v285 = vshrl.u32 %v284, 7
    %v286 = vsub.s32 0, %v285
    %v287 = vrot.slane %v282, %v286
    %289 = vbcast.lane.b32.xlu0 %v287, 256
    %v290 = vpop.permute.xlu0 %289
    %v291 = vlaneseq
    %v292 = vshrl.u32 %v291, 7
    %v293 = vsub.s32 1, %v292
    %v294 = vrot.slane %v282, %v293
    %296 = vbcast.lane.b32.xlu0 %v294, 256
    %v297 = vpop.permute.xlu0 %296
    %v298 = vlaneseq
    %v299 = vshrl.u32 %v298, 7
    %v300 = vsub.s32 2, %v299
    %v301 = vrot.slane %v282, %v300
    %303 = vbcast.lane.b32.xlu0 %v301, 256
    %v304 = vpop.permute.xlu0 %303
    %v305 = vlaneseq
    %v306 = vshrl.u32 %v305, 7
    %v307 = vsub.s32 3, %v306
    %v308 = vrot.slane %v282, %v307
    %310 = vbcast.lane.b32.xlu0 %v308, 256
    %v311 = vpop.permute.xlu0 %310
    %v312 = vlaneseq
    %v313 = vshrl.u32 %v312, 7
    %v314 = vsub.s32 4, %v313
    %v315 = vrot.slane %v282, %v314
    %317 = vbcast.lane.b32.xlu0 %v315, 256
    %v318 = vpop.permute.xlu0 %317
    %v319 = vlaneseq
    %v320 = vshrl.u32 %v319, 7
    %v321 = vsub.s32 5, %v320
    %v322 = vrot.slane %v282, %v321
    %324 = vbcast.lane.b32.xlu0 %v322, 256
    %v325 = vpop.permute.xlu0 %324
    %v326 = vlaneseq
    %v327 = vshrl.u32 %v326, 7
    %v328 = vsub.s32 6, %v327
    %v329 = vrot.slane %v282, %v328
    %331 = vbcast.lane.b32.xlu0 %v329, 256
    %v332 = vpop.permute.xlu0 %331
    %v333 = vlaneseq
    %v334 = vshrl.u32 %v333, 7
    %v335 = vsub.s32 7, %v334
    %v336 = vrot.slane %v282, %v335
    %338 = vbcast.lane.b32.xlu0 %v336, 256
    %v339 = vpop.permute.xlu0 %338
    %v340 = vlaneseq
    %v341 = vshrl.u32 %v340, 7
    %v342 = vsub.s32 0, %v341
    %v343 = vrot.slane %v283, %v342
    %345 = vbcast.lane.b32.xlu0 %v343, 256
    %v346 = vpop.permute.xlu0 %345
    %v347 = vlaneseq
    %v348 = vshrl.u32 %v347, 7
    %v349 = vsub.s32 1, %v348
    %v350 = vrot.slane %v283, %v349
    %352 = vbcast.lane.b32.xlu0 %v350, 256
    %v353 = vpop.permute.xlu0 %352
    %v354 = vlaneseq
    %v355 = vshrl.u32 %v354, 7
    %v356 = vsub.s32 2, %v355
    %v357 = vrot.slane %v283, %v356
    %359 = vbcast.lane.b32.xlu0 %v357, 256
    %v360 = vpop.permute.xlu0 %359
    %v361 = vlaneseq
    %v362 = vshrl.u32 %v361, 7
    %v363 = vsub.s32 3, %v362
    %v364 = vrot.slane %v283, %v363
    %366 = vbcast.lane.b32.xlu0 %v364, 256
    %v367 = vpop.permute.xlu0 %366
    %v368 = vlaneseq
    %v369 = vshrl.u32 %v368, 7
    %v370 = vsub.s32 4, %v369
    %v371 = vrot.slane %v283, %v370
    %373 = vbcast.lane.b32.xlu0 %v371, 256
    %v374 = vpop.permute.xlu0 %373
    %v375 = vlaneseq
    %v376 = vshrl.u32 %v375, 7
    %v377 = vsub.s32 5, %v376
    %v378 = vrot.slane %v283, %v377
    %380 = vbcast.lane.b32.xlu0 %v378, 256
    %v381 = vpop.permute.xlu0 %380
    %v382 = vlaneseq
    %v383 = vshrl.u32 %v382, 7
    %v384 = vsub.s32 6, %v383
    %v385 = vrot.slane %v283, %v384
    %387 = vbcast.lane.b32.xlu0 %v385, 256
    %v388 = vpop.permute.xlu0 %387
    %v389 = vlaneseq
    %v390 = vshrl.u32 %v389, 7
    %v391 = vsub.s32 7, %v390
    %v392 = vrot.slane %v283, %v391
    %394 = vbcast.lane.b32.xlu0 %v392, 256
    %v395 = vpop.permute.xlu0 %394
    %v396 = vmul.f32 %v264, %v290
    %v397 = vmul.f32 %v265, %v297
    %v398 = vmul.f32 %v266, %v304
    %v399 = vmul.f32 %v267, %v311
    %v400 = vmul.f32 %v268, %v318
    %v401 = vmul.f32 %v269, %v325
    %v402 = vmul.f32 %v270, %v332
    %v403 = vmul.f32 %v271, %v339
    %v404 = vmul.f32 %v272, %v346
    %v405 = vmul.f32 %v273, %v353
    %v406 = vmul.f32 %v274, %v360
    %v407 = vmul.f32 %v275, %v367
    %v408 = vmul.f32 %v276, %v374
    %v409 = vmul.f32 %v277, %v381
    %v410 = vmul.f32 %v278, %v388
    %v411 = vmul.f32 %v279, %v395
    %v412 = vsel %vm123, %v396, 0.0
    %v413 = vrot.slane %v412, 4
    %v414 = vadd.f32 %v412, %v413
    %v415 = vrot.slane %v414, 2
    %v416 = vadd.f32 %v414, %v415
    %v417 = vrot.slane %v416, 1
    %v418 = vadd.f32 %v416, %v417
    %v419 = vsel %vm123, %v397, 0.0
    %v420 = vrot.slane %v419, 4
    %v421 = vadd.f32 %v419, %v420
    %v422 = vrot.slane %v421, 2
    %v423 = vadd.f32 %v421, %v422
    %v424 = vrot.slane %v423, 1
    %v425 = vadd.f32 %v423, %v424
    %v426 = vsel %vm123, %v398, 0.0
    %v427 = vrot.slane %v426, 4
    %v428 = vadd.f32 %v426, %v427
    %v429 = vrot.slane %v428, 2
    %v430 = vadd.f32 %v428, %v429
    %v431 = vrot.slane %v430, 1
    %v432 = vadd.f32 %v430, %v431
    %v433 = vsel %vm123, %v399, 0.0
    %v434 = vrot.slane %v433, 4
    %v435 = vadd.f32 %v433, %v434
    %v436 = vrot.slane %v435, 2
    %v437 = vadd.f32 %v435, %v436
    %v438 = vrot.slane %v437, 1
    %v439 = vadd.f32 %v437, %v438
    %v440 = vsel %vm123, %v400, 0.0
    %v441 = vrot.slane %v440, 4
    %v442 = vadd.f32 %v440, %v441
    %v443 = vrot.slane %v442, 2
    %v444 = vadd.f32 %v442, %v443
    %v445 = vrot.slane %v444, 1
    %v446 = vadd.f32 %v444, %v445
    %v447 = vsel %vm123, %v401, 0.0
    %v448 = vrot.slane %v447, 4
    %v449 = vadd.f32 %v447, %v448
    %v450 = vrot.slane %v449, 2
    %v451 = vadd.f32 %v449, %v450
    %v452 = vrot.slane %v451, 1
    %v453 = vadd.f32 %v451, %v452
    %v454 = vsel %vm123, %v402, 0.0
    %v455 = vrot.slane %v454, 4
    %v456 = vadd.f32 %v454, %v455
    %v457 = vrot.slane %v456, 2
    %v458 = vadd.f32 %v456, %v457
    %v459 = vrot.slane %v458, 1
    %v460 = vadd.f32 %v458, %v459
    %v461 = vsel %vm123, %v403, 0.0
    %v462 = vrot.slane %v461, 4
    %v463 = vadd.f32 %v461, %v462
    %v464 = vrot.slane %v463, 2
    %v465 = vadd.f32 %v463, %v464
    %v466 = vrot.slane %v465, 1
    %v467 = vadd.f32 %v465, %v466
    %v468 = vsel %vm123, %v404, 0.0
    %v469 = vrot.slane %v468, 4
    %v470 = vadd.f32 %v468, %v469
    %v471 = vrot.slane %v470, 2
    %v472 = vadd.f32 %v470, %v471
    %v473 = vrot.slane %v472, 1
    %v474 = vadd.f32 %v472, %v473
    %v475 = vsel %vm123, %v405, 0.0
    %v476 = vrot.slane %v475, 4
    %v477 = vadd.f32 %v475, %v476
    %v478 = vrot.slane %v477, 2
    %v479 = vadd.f32 %v477, %v478
    %v480 = vrot.slane %v479, 1
    %v481 = vadd.f32 %v479, %v480
    %v482 = vsel %vm123, %v406, 0.0
    %v483 = vrot.slane %v482, 4
    %v484 = vadd.f32 %v482, %v483
    %v485 = vrot.slane %v484, 2
    %v486 = vadd.f32 %v484, %v485
    %v487 = vrot.slane %v486, 1
    %v488 = vadd.f32 %v486, %v487
    %v489 = vsel %vm123, %v407, 0.0
    %v490 = vrot.slane %v489, 4
    %v491 = vadd.f32 %v489, %v490
    %v492 = vrot.slane %v491, 2
    %v493 = vadd.f32 %v491, %v492
    %v494 = vrot.slane %v493, 1
    %v495 = vadd.f32 %v493, %v494
    %v496 = vsel %vm123, %v408, 0.0
    %v497 = vrot.slane %v496, 4
    %v498 = vadd.f32 %v496, %v497
    %v499 = vrot.slane %v498, 2
    %v500 = vadd.f32 %v498, %v499
    %v501 = vrot.slane %v500, 1
    %v502 = vadd.f32 %v500, %v501
    %v503 = vsel %vm123, %v409, 0.0
    %v504 = vrot.slane %v503, 4
    %v505 = vadd.f32 %v503, %v504
    %v506 = vrot.slane %v505, 2
    %v507 = vadd.f32 %v505, %v506
    %v508 = vrot.slane %v507, 1
    %v509 = vadd.f32 %v507, %v508
    %v510 = vsel %vm123, %v410, 0.0
    %v511 = vrot.slane %v510, 4
    %v512 = vadd.f32 %v510, %v511
    %v513 = vrot.slane %v512, 2
    %v514 = vadd.f32 %v512, %v513
    %v515 = vrot.slane %v514, 1
    %v516 = vadd.f32 %v514, %v515
    %v517 = vsel %vm123, %v411, 0.0
    %v518 = vrot.slane %v517, 4
    %v519 = vadd.f32 %v517, %v518
    %v520 = vrot.slane %v519, 2
    %v521 = vadd.f32 %v519, %v520
    %v522 = vrot.slane %v521, 1
    %v523 = vadd.f32 %v521, %v522
    %v524 = vmul.f32 %v418, %v418
    %v525 = vmul.f32 %v425, %v425
    %v526 = vmul.f32 %v432, %v432
    %v527 = vmul.f32 %v439, %v439
    %v528 = vmul.f32 %v446, %v446
    %v529 = vmul.f32 %v453, %v453
    %v530 = vmul.f32 %v460, %v460
    %v531 = vmul.f32 %v467, %v467
    %v532 = vmul.f32 %v474, %v474
    %v533 = vmul.f32 %v481, %v481
    %v534 = vmul.f32 %v488, %v488
    %v535 = vmul.f32 %v495, %v495
    %v536 = vmul.f32 %v502, %v502
    %v537 = vmul.f32 %v509, %v509
    %v538 = vmul.f32 %v516, %v516
    %v539 = vmul.f32 %v523, %v523
    %v556 = vsel %vm196, %v525, %v524
    %v557 = vsel %vm198, %v526, %v556
    %v558 = vsel %vm200, %v527, %v557
    %v559 = vsel %vm202, %v528, %v558
    %v560 = vsel %vm204, %v529, %v559
    %v561 = vsel %vm206, %v530, %v560
    %v562 = vsel %vm208, %v531, %v561
    %v563 = vsel %vm196, %v533, %v532
    %v564 = vsel %vm198, %v534, %v563
    %v565 = vsel %vm200, %v535, %v564
    %v566 = vsel %vm202, %v536, %v565
    %v567 = vsel %vm204, %v537, %v566
    %v568 = vsel %vm206, %v538, %v567
    %v569 = vsel %vm208, %v539, %v568
    %v572 = vsel %vm123, %v562, 0.0
    %573 = vadd.xlane.f32.xlu0 %v572
    %v574 = vpop.xlane.xlu0 %573
    %v575 = vsel %vm123, %v569, 0.0
    %576 = vadd.xlane.f32.xlu0 %v575
    %v577 = vpop.xlane.xlu0 %576
    %v578 = vmax.f32 %v574, 1e-24
    %v579 = vmax.f32 %v577, 1e-24
    %v580 = vrsqrt.pop %v578
    %v581 = vrsqrt.pop %v579
    %v584 = vrot.slane %v580, 1
    %v585 = vrot.slane %v580, 2
    %v586 = vrot.slane %v580, 3
    %v587 = vrot.slane %v580, 4
    %v588 = vrot.slane %v580, 5
    %v589 = vrot.slane %v580, 6
    %v590 = vrot.slane %v580, 7
    %v591 = vrot.slane %v581, 1
    %v592 = vrot.slane %v581, 2
    %v593 = vrot.slane %v581, 3
    %v594 = vrot.slane %v581, 4
    %v595 = vrot.slane %v581, 5
    %v596 = vrot.slane %v581, 6
    %v597 = vrot.slane %v581, 7
    %v614 = vmul.f32 %v418, %v580
    %v615 = vmul.f32 %v425, %v584
    %v616 = vmul.f32 %v432, %v585
    %v617 = vmul.f32 %v439, %v586
    %v618 = vmul.f32 %v446, %v587
    %v619 = vmul.f32 %v453, %v588
    %v620 = vmul.f32 %v460, %v589
    %v621 = vmul.f32 %v467, %v590
    %v622 = vmul.f32 %v474, %v581
    %v623 = vmul.f32 %v481, %v591
    %v624 = vmul.f32 %v488, %v592
    %v625 = vmul.f32 %v495, %v593
    %v626 = vmul.f32 %v502, %v594
    %v627 = vmul.f32 %v509, %v595
    %v628 = vmul.f32 %v516, %v596
    %v629 = vmul.f32 %v523, %v597
    %v646 = vrot.slane %v615, 7
    %v647 = vsel %vm196, %v646, %v614
    %v648 = vrot.slane %v616, 6
    %v649 = vsel %vm198, %v648, %v647
    %v650 = vrot.slane %v617, 5
    %v651 = vsel %vm200, %v650, %v649
    %v652 = vrot.slane %v618, 4
    %v653 = vsel %vm202, %v652, %v651
    %v654 = vrot.slane %v619, 3
    %v655 = vsel %vm204, %v654, %v653
    %v656 = vrot.slane %v620, 2
    %v657 = vsel %vm206, %v656, %v655
    %v658 = vrot.slane %v621, 1
    %v659 = vsel %vm208, %v658, %v657
    %v660 = vrot.slane %v623, 7
    %v661 = vsel %vm196, %v660, %v622
    %v662 = vrot.slane %v624, 6
    %v663 = vsel %vm198, %v662, %v661
    %v664 = vrot.slane %v625, 5
    %v665 = vsel %vm200, %v664, %v663
    %v666 = vrot.slane %v626, 4
    %v667 = vsel %vm202, %v666, %v665
    %v668 = vrot.slane %v627, 3
    %v669 = vsel %vm204, %v668, %v667
    %v670 = vrot.slane %v628, 2
    %v671 = vsel %vm206, %v670, %v669
    %v672 = vrot.slane %v629, 1
    %v673 = vsel %vm208, %v672, %v671
    %676 = vst.msk [vmem:[#allocation8] sm:$0xff] %vm123, %v659
    %677 = vst.msk [vmem:[#allocation8 + $0x8] sm:$0xff] %vm123, %v673
    // Predicated region
    $region26: #{tpu_custom_call.1} parent=1 // pred_check
      _
    $region27: #{tpu_custom_call.1} parent=1 // pred_check_branch
      %679 = sbr.rel (0) target = $region29
    $region28: #{tpu_custom_call.1} parent=1 // pred_region
      %s681 = ssub.s32 128, 128
      %682 = vsyncadd [#allocation4], %s681
      %s684 = sshll.u32 [#allocation7], 4
      %s685 = int_to_ptr.vmem [resolvable:$true] %s684
      %687 = dma.vmem_to_hbm [thread:$0]  %s685, 128, %s4, [#allocation4]
    $region29: #{tpu_custom_call.1} parent=1 // pred_fallthru
      _
    // Predicated region
    $region30: #{tpu_custom_call.1} parent=1 // pred_check
      _
    $region31: #{tpu_custom_call.1} parent=1 // pred_check_branch
      %689 = sbr.rel (0) target = $region33
    $region32: #{tpu_custom_call.1} parent=1 // pred_region
      %s691 = ssub.s32 256, 256
      %692 = vsyncadd [#allocation9], %s691
      %s693 = sshll.u32 [#allocation8], 4
      %s694 = int_to_ptr.vmem [resolvable:$true] %s693
      %699 = dma.vmem_to_hbm [thread:$0]  %s694, 256, %s5, [#allocation9], 128, 128, 8
    $region33: #{tpu_custom_call.1} parent=1 // pred_fallthru
      _
    // Predicated region
    $region34: #{tpu_custom_call.1} parent=1 // pred_check
      _
    $region35: #{tpu_custom_call.1} parent=1 // pred_check_branch
      %701 = sbr.rel (0) target = $region37
    $region36: #{tpu_custom_call.1} parent=1 // pred_region
      %702 = dma.done [#allocation4], 128
    $region37: #{tpu_custom_call.1} parent=1 // pred_fallthru
      _
    // Predicated region
    $region38: #{tpu_custom_call.1} parent=1 // pred_check
      _
    $region39: #{tpu_custom_call.1} parent=1 // pred_check_branch
      %704 = sbr.rel (0) target = $region41
    $region40: #{tpu_custom_call.1} parent=1 // pred_region
      %705 = dma.done [#allocation9], 256
    $region41: #{tpu_custom_call.1} parent=1 // pred_fallthru
      _
    %706 = vsyncpa [#allocation3], 1
    %707 = vsyncpa [#allocation6], 1
    %708 = vsyncpa [#allocation4], 1
    %709 = vsyncpa [#allocation9], 1

</llo_original>
